<compile_context>
chip_gen: v7x
topology: tpu7x:2x2x1
jax: 0.10.0
libtpu: 0.0.40
codegen_flags: <defaults>
</compile_context>

<pallas_src>
import math
import functools

import jax
import jax.numpy as jnp
from jax import lax
from jax.experimental import pallas as pl
from jax.experimental.pallas import tpu as pltpu

Z_DIM = 64
DIM = 128
OUT_FEATURES = 784
N_LAYER = 3
LN_EPS = 1e-5


def _round_up(x, m):
    return ((x + m - 1) // m) * m


def _choose_tb(B):
    """Batch tile: big enough to fill the MXU / amortize per-step overhead,
    grid kept >= 2 when possible (both v7x TensorCores busy)."""
    b8 = _round_up(max(B, 1), 8)
    if b8 >= 4096:
        return 1024                        # grid >= 4, ~86% of HBM roofline
    if b8 >= 1024:
        return 512                         # grid >= 2
    if b8 >= 256:
        # two tiles, rounded to a multiple of 128 (full MXU M-dimension)
        return _round_up(-(-b8 // 2), 128)
    if b8 >= 16:
        return _round_up(-(-b8 // 2), 8)   # two small tiles
    return 8                               # tiny batch (e.g. the B=2 demo)


def _gelu_exact(x):
    # PyTorch nn.GELU() default = exact erf formulation
    return 0.5 * x * (1.0 + lax.erf(x * (1.0 / math.sqrt(2.0))))


def decoder_kernel(x_ref, w_stem_ref, b_stem_ref,
                   ln_g_ref, ln_b_ref, w_blk_ref, b_blk_ref,
                   w_out_ref, b_out_ref, o_ref):
    # x_ref: (TB, Z_DIM) tile of the (possibly padded) input batch
    x = x_ref[...].astype(jnp.float32)
    tb = x.shape[0]

    # stem: Linear(z_dim -> dim); bias via row-broadcast add (sublane bcast)
    h = jnp.dot(x, w_stem_ref[...], preferred_element_type=jnp.float32)
    h = h + b_stem_ref[...]

    # Hoist parameter broadcasts out of the unrolled residual loop
    # (shared weights, applied N_LAYER times — matches the PyTorch module).
    ln_g = jnp.broadcast_to(ln_g_ref[...], (tb, DIM))
    ln_b = jnp.broadcast_to(ln_b_ref[...], (tb, DIM))
    b_blk = jnp.broadcast_to(b_blk_ref[...], (tb, DIM))
    w_blk = w_blk_ref[...]

    for _ in range(N_LAYER):
        mu = jnp.mean(h, axis=-1, keepdims=True)
        var = jnp.mean(jnp.square(h - mu), axis=-1, keepdims=True)
        xn = (h - mu) * lax.rsqrt(var + LN_EPS)
        xn = xn * ln_g + ln_b
        y = jnp.dot(xn, w_blk, preferred_element_type=jnp.float32) + b_blk
        h = h + _gelu_exact(y)

    # output head: Linear(dim -> 784) + sigmoid, written 784-wide directly.
    o = jnp.dot(h, w_out_ref[...], preferred_element_type=jnp.float32)
    o = o + b_out_ref[...]
    # sigmoid(x) == 0.5*tanh(0.5*x) + 0.5  (single EUP op instead of exp+div)
    o_ref[...] = (0.5 * jnp.tanh(0.5 * o) + 0.5).astype(o_ref.dtype)


@functools.partial(jax.jit, static_argnames=("tb",))
def _forward_impl(x, params, tb):
    B = x.shape[0]
    B_pad = _round_up(max(B, tb), tb)
    x = x.astype(jnp.float32)
    x_pad = x if B_pad == B else jnp.pad(x, ((0, B_pad - B), (0, 0)))

    (w_stem, b_stem, ln_g, ln_b, w_blk, b_blk, w_out, b_out) = params

    grid = (B_pad // tb,)

    flops_per_row = (2 * Z_DIM * DIM
                     + N_LAYER * 2 * DIM * DIM
                     + 2 * DIM * OUT_FEATURES)
    transc_per_row = N_LAYER * DIM + OUT_FEATURES        # erf + tanh
    bytes_weights = 4 * (Z_DIM * DIM + DIM + 2 * DIM
                         + DIM * DIM + DIM
                         + DIM * OUT_FEATURES + OUT_FEATURES)
    cost = pl.CostEstimate(
        flops=B_pad * flops_per_row,
        transcendentals=B_pad * transc_per_row,
        bytes_accessed=4 * B_pad * (Z_DIM + OUT_FEATURES) + bytes_weights,
    )

    out = pl.pallas_call(
        decoder_kernel,
        out_shape=jax.ShapeDtypeStruct((B_pad, OUT_FEATURES), jnp.float32),
        grid_spec=pltpu.PrefetchScalarGridSpec(
            num_scalar_prefetch=0,
            grid=grid,
            in_specs=[
                pl.BlockSpec((tb, Z_DIM), lambda i: (i, 0)),            # x tile
                pl.BlockSpec((Z_DIM, DIM), lambda i: (0, 0)),           # w_stem
                pl.BlockSpec((1, DIM), lambda i: (0, 0)),               # b_stem
                pl.BlockSpec((1, DIM), lambda i: (0, 0)),               # ln gamma
                pl.BlockSpec((1, DIM), lambda i: (0, 0)),               # ln beta
                pl.BlockSpec((DIM, DIM), lambda i: (0, 0)),             # w_blk
                pl.BlockSpec((1, DIM), lambda i: (0, 0)),               # b_blk
                pl.BlockSpec((DIM, OUT_FEATURES), lambda i: (0, 0)),    # w_out
                pl.BlockSpec((1, OUT_FEATURES), lambda i: (0, 0)),      # b_out
            ],
            out_specs=pl.BlockSpec((tb, OUT_FEATURES), lambda i: (i, 0)),
        ),
        compiler_params=pltpu.CompilerParams(
            dimension_semantics=("parallel",)),
        cost_estimate=cost,
    )(x_pad, w_stem, b_stem, ln_g, ln_b, w_blk, b_blk, w_out, b_out)

    return out if B_pad == B else out[:B]


def image_decoder_forward(x, params, tb=None):
    """x: (B, Z_DIM) float32 -> (B, OUT_FEATURES) float32."""
    if tb is None:
        tb = _choose_tb(x.shape[0])
    return _forward_impl(x, params, tb)


def init_params(key):
    """Deterministic synthetic parameters (PyTorch-Linear-like uniform init)."""
    ks = jax.random.split(key, 6)

    def lin(k, fan_in, fan_out):
        bound = 1.0 / math.sqrt(fan_in)
        kw, kb = jax.random.split(k)
        w = jax.random.uniform(kw, (fan_in, fan_out), jnp.float32, -bound, bound)
        b = jax.random.uniform(kb, (1, fan_out), jnp.float32, -bound, bound)
        return w, b

    w_stem, b_stem = lin(ks[0], Z_DIM, DIM)
    w_blk, b_blk = lin(ks[1], DIM, DIM)          # shared across the 3 blocks
    w_out, b_out = lin(ks[2], DIM, OUT_FEATURES)
    ln_g = jnp.ones((1, DIM), jnp.float32)
    ln_b = jnp.zeros((1, DIM), jnp.float32)
    return (w_stem, b_stem, ln_g, ln_b, w_blk, b_blk, w_out, b_out)


def reference_forward(x, params):
    """Plain-JAX reference mirroring the PyTorch forward."""
    (w_stem, b_stem, ln_g, ln_b, w_blk, b_blk, w_out, b_out) = params
    h = x @ w_stem + b_stem
    for _ in range(N_LAYER):
        mu = jnp.mean(h, axis=-1, keepdims=True)
        var = jnp.mean(jnp.square(h - mu), axis=-1, keepdims=True)
        xn = (h - mu) / jnp.sqrt(var + LN_EPS) * ln_g + ln_b
        y = xn @ w_blk + b_blk
        h = h + 0.5 * y * (1.0 + lax.erf(y / math.sqrt(2.0)))
    return jax.nn.sigmoid(h @ w_out + b_out)


if __name__ == "__main__":
    key = jax.random.PRNGKey(0)
    k_param, k_x = jax.random.split(key)
    params = init_params(k_param)

    # Small demo batch (tiny tile auto-selected; large batches get 128-1024
    # row tiles and a multi-step parallel grid).
    B = 2
    x = jax.random.normal(k_x, (B, Z_DIM), jnp.float32)

    out = image_decoder_forward(x, params)
    out = jax.block_until_ready(out)

    ref = reference_forward(x, params)
    assert out.shape == (B, OUT_FEATURES)
    assert jnp.allclose(out, ref, atol=1e-5, rtol=1e-5)

    # Also exercise the large-batch path (256-row tiles, grid == 2, no pad /
    # slice on either side) for coverage.
    B2 = 512
    x2 = jax.random.normal(jax.random.PRNGKey(1), (B2, Z_DIM), jnp.float32)
    out2 = jax.block_until_ready(image_decoder_forward(x2, params))
    ref2 = reference_forward(x2, params)
    assert out2.shape == (B2, OUT_FEATURES)
    assert jnp.allclose(out2, ref2, atol=1e-5, rtol=1e-5)

    print("KERNEL_OK")
</pallas_src>

<mosaic_0001>
module attributes {stable_mosaic.version = 11 : i64} {
  func.func @decoder_kernel(%arg0: i32, %arg1: memref<8x64xf32, #tpu.memory_space<vmem>>, %arg2: memref<64x128xf32, #tpu.memory_space<vmem>>, %arg3: memref<1x128xf32, #tpu.memory_space<vmem>>, %arg4: memref<1x128xf32, #tpu.memory_space<vmem>>, %arg5: memref<1x128xf32, #tpu.memory_space<vmem>>, %arg6: memref<128x128xf32, #tpu.memory_space<vmem>>, %arg7: memref<1x128xf32, #tpu.memory_space<vmem>>, %arg8: memref<128x784xf32, #tpu.memory_space<vmem>>, %arg9: memref<1x784xf32, #tpu.memory_space<vmem>>, %arg10: memref<8x784xf32, #tpu.memory_space<vmem>>) attributes {dimension_semantics = [#tpu.dimension_semantics<parallel>], iteration_bounds = array<i64: 1>, scalar_prefetch = 0 : i64, scratch_operands = 0 : i64, tpu.core_type = #tpu.core_type<tc>, window_params = [{transform_indices = @transform_0, window_bounds = array<i64: 8, 64>}, {pipeline_mode = #tpu.pipeline_mode<synchronous>, transform_indices = @transform_1, window_bounds = array<i64: 64, 128>}, {pipeline_mode = #tpu.pipeline_mode<synchronous>, transform_indices = @transform_2, window_bounds = array<i64: 1, 128>}, {pipeline_mode = #tpu.pipeline_mode<synchronous>, transform_indices = @transform_3, window_bounds = array<i64: 1, 128>}, {pipeline_mode = #tpu.pipeline_mode<synchronous>, transform_indices = @transform_4, window_bounds = array<i64: 1, 128>}, {pipeline_mode = #tpu.pipeline_mode<synchronous>, transform_indices = @transform_5, window_bounds = array<i64: 128, 128>}, {pipeline_mode = #tpu.pipeline_mode<synchronous>, transform_indices = @transform_6, window_bounds = array<i64: 1, 128>}, {pipeline_mode = #tpu.pipeline_mode<synchronous>, transform_indices = @transform_7, window_bounds = array<i64: 128, 784>}, {pipeline_mode = #tpu.pipeline_mode<synchronous>, transform_indices = @transform_8, window_bounds = array<i64: 1, 784>}, {transform_indices = @transform_9, window_bounds = array<i64: 8, 784>}]} {
    %c0 = arith.constant 0 : index
    %c0_0 = arith.constant 0 : index
    %0 = vector.load %arg1[%c0, %c0_0] : memref<8x64xf32, #tpu.memory_space<vmem>>, vector<8x64xf32>
    %c0_1 = arith.constant 0 : index
    %c0_2 = arith.constant 0 : index
    %1 = vector.load %arg2[%c0_1, %c0_2] : memref<64x128xf32, #tpu.memory_space<vmem>>, vector<64x128xf32>
    %cst = arith.constant dense<0.000000e+00> : vector<8x128xf32>
    %2 = tpu.matmul %0, %1, %cst {dimension_numbers = #tpu.dot_dimension_numbers<[1], [0], [0], [1], [0, 0, 1, 1], [], []>} : vector<8x64xf32>, vector<64x128xf32>, vector<8x128xf32> -> vector<8x128xf32>
    %c0_3 = arith.constant 0 : index
    %c0_4 = arith.constant 0 : index
    %3 = vector.load %arg3[%c0_3, %c0_4] : memref<1x128xf32, #tpu.memory_space<vmem>>, vector<1x128xf32>
    %4 = vector.broadcast %3 : vector<1x128xf32> to vector<8x128xf32>
    %5 = arith.addf %2, %4 : vector<8x128xf32>
    %c0_5 = arith.constant 0 : index
    %c0_6 = arith.constant 0 : index
    %6 = vector.load %arg4[%c0_5, %c0_6] : memref<1x128xf32, #tpu.memory_space<vmem>>, vector<1x128xf32>
    %7 = vector.shape_cast %6 : vector<1x128xf32> to vector<1x128xf32>
    %8 = vector.broadcast %7 : vector<1x128xf32> to vector<8x128xf32>
    %c0_7 = arith.constant 0 : index
    %c0_8 = arith.constant 0 : index
    %9 = vector.load %arg5[%c0_7, %c0_8] : memref<1x128xf32, #tpu.memory_space<vmem>>, vector<1x128xf32>
    %10 = vector.shape_cast %9 : vector<1x128xf32> to vector<1x128xf32>
    %11 = vector.broadcast %10 : vector<1x128xf32> to vector<8x128xf32>
    %c0_9 = arith.constant 0 : index
    %c0_10 = arith.constant 0 : index
    %12 = vector.load %arg7[%c0_9, %c0_10] : memref<1x128xf32, #tpu.memory_space<vmem>>, vector<1x128xf32>
    %13 = vector.shape_cast %12 : vector<1x128xf32> to vector<1x128xf32>
    %14 = vector.broadcast %13 : vector<1x128xf32> to vector<8x128xf32>
    %c0_11 = arith.constant 0 : index
    %c0_12 = arith.constant 0 : index
    %15 = vector.load %arg6[%c0_11, %c0_12] : memref<128x128xf32, #tpu.memory_space<vmem>>, vector<128x128xf32>
    %cst_13 = arith.constant dense<0.000000e+00> : vector<8xf32>
    %16 = vector.multi_reduction <add>, %5, %cst_13 [1] : vector<8x128xf32> to vector<8xf32>
    %17 = vector.shape_cast %16 : vector<8xf32> to vector<8x1xf32>
    %cst_14 = arith.constant 1.280000e+02 : f32
    %18 = vector.broadcast %cst_14 : f32 to vector<8x1xf32>
    %19 = arith.divf %17, %18 : vector<8x1xf32>
    %20 = vector.broadcast %19 : vector<8x1xf32> to vector<8x128xf32>
    %21 = arith.subf %5, %20 : vector<8x128xf32>
    %22 = arith.mulf %21, %21 : vector<8x128xf32>
    %cst_15 = arith.constant dense<0.000000e+00> : vector<8xf32>
    %23 = vector.multi_reduction <add>, %22, %cst_15 [1] : vector<8x128xf32> to vector<8xf32>
    %24 = vector.shape_cast %23 : vector<8xf32> to vector<8x1xf32>
    %cst_16 = arith.constant 1.280000e+02 : f32
    %25 = vector.broadcast %cst_16 : f32 to vector<8x1xf32>
    %26 = arith.divf %24, %25 : vector<8x1xf32>
    %27 = vector.broadcast %19 : vector<8x1xf32> to vector<8x128xf32>
    %28 = arith.subf %5, %27 : vector<8x128xf32>
    %cst_17 = arith.constant 9.99999974E-6 : f32
    %29 = vector.broadcast %cst_17 : f32 to vector<8x1xf32>
    %30 = arith.addf %26, %29 : vector<8x1xf32>
    %31 = math.rsqrt %30 : vector<8x1xf32>
    %32 = vector.broadcast %31 : vector<8x1xf32> to vector<8x128xf32>
    %33 = arith.mulf %28, %32 : vector<8x128xf32>
    %34 = arith.mulf %33, %8 : vector<8x128xf32>
    %35 = arith.addf %34, %11 : vector<8x128xf32>
    %cst_18 = arith.constant dense<0.000000e+00> : vector<8x128xf32>
    %36 = tpu.matmul %35, %15, %cst_18 {dimension_numbers = #tpu.dot_dimension_numbers<[1], [0], [0], [1], [0, 0, 1, 1], [], []>} : vector<8x128xf32>, vector<128x128xf32>, vector<8x128xf32> -> vector<8x128xf32>
    %37 = arith.addf %36, %14 : vector<8x128xf32>
    %cst_19 = arith.constant 5.000000e-01 : f32
    %38 = vector.broadcast %cst_19 : f32 to vector<8x128xf32>
    %39 = arith.mulf %38, %37 : vector<8x128xf32>
    %cst_20 = arith.constant 0.707106769 : f32
    %40 = vector.broadcast %cst_20 : f32 to vector<8x128xf32>
    %41 = arith.mulf %37, %40 : vector<8x128xf32>
    %42 = math.erf %41 : vector<8x128xf32>
    %cst_21 = arith.constant 1.000000e+00 : f32
    %43 = vector.broadcast %cst_21 : f32 to vector<8x128xf32>
    %44 = arith.addf %43, %42 : vector<8x128xf32>
    %45 = arith.mulf %39, %44 : vector<8x128xf32>
    %46 = arith.addf %5, %45 : vector<8x128xf32>
    %cst_22 = arith.constant dense<0.000000e+00> : vector<8xf32>
    %47 = vector.multi_reduction <add>, %46, %cst_22 [1] : vector<8x128xf32> to vector<8xf32>
    %48 = vector.shape_cast %47 : vector<8xf32> to vector<8x1xf32>
    %cst_23 = arith.constant 1.280000e+02 : f32
    %49 = vector.broadcast %cst_23 : f32 to vector<8x1xf32>
    %50 = arith.divf %48, %49 : vector<8x1xf32>
    %51 = vector.broadcast %50 : vector<8x1xf32> to vector<8x128xf32>
    %52 = arith.subf %46, %51 : vector<8x128xf32>
    %53 = arith.mulf %52, %52 : vector<8x128xf32>
    %cst_24 = arith.constant dense<0.000000e+00> : vector<8xf32>
    %54 = vector.multi_reduction <add>, %53, %cst_24 [1] : vector<8x128xf32> to vector<8xf32>
    %55 = vector.shape_cast %54 : vector<8xf32> to vector<8x1xf32>
    %cst_25 = arith.constant 1.280000e+02 : f32
    %56 = vector.broadcast %cst_25 : f32 to vector<8x1xf32>
    %57 = arith.divf %55, %56 : vector<8x1xf32>
    %58 = vector.broadcast %50 : vector<8x1xf32> to vector<8x128xf32>
    %59 = arith.subf %46, %58 : vector<8x128xf32>
    %cst_26 = arith.constant 9.99999974E-6 : f32
    %60 = vector.broadcast %cst_26 : f32 to vector<8x1xf32>
    %61 = arith.addf %57, %60 : vector<8x1xf32>
    %62 = math.rsqrt %61 : vector<8x1xf32>
    %63 = vector.broadcast %62 : vector<8x1xf32> to vector<8x128xf32>
    %64 = arith.mulf %59, %63 : vector<8x128xf32>
    %65 = arith.mulf %64, %8 : vector<8x128xf32>
    %66 = arith.addf %65, %11 : vector<8x128xf32>
    %cst_27 = arith.constant dense<0.000000e+00> : vector<8x128xf32>
    %67 = tpu.matmul %66, %15, %cst_27 {dimension_numbers = #tpu.dot_dimension_numbers<[1], [0], [0], [1], [0, 0, 1, 1], [], []>} : vector<8x128xf32>, vector<128x128xf32>, vector<8x128xf32> -> vector<8x128xf32>
    %68 = arith.addf %67, %14 : vector<8x128xf32>
    %cst_28 = arith.constant 5.000000e-01 : f32
    %69 = vector.broadcast %cst_28 : f32 to vector<8x128xf32>
    %70 = arith.mulf %69, %68 : vector<8x128xf32>
    %cst_29 = arith.constant 0.707106769 : f32
    %71 = vector.broadcast %cst_29 : f32 to vector<8x128xf32>
    %72 = arith.mulf %68, %71 : vector<8x128xf32>
    %73 = math.erf %72 : vector<8x128xf32>
    %cst_30 = arith.constant 1.000000e+00 : f32
    %74 = vector.broadcast %cst_30 : f32 to vector<8x128xf32>
    %75 = arith.addf %74, %73 : vector<8x128xf32>
    %76 = arith.mulf %70, %75 : vector<8x128xf32>
    %77 = arith.addf %46, %76 : vector<8x128xf32>
    %cst_31 = arith.constant dense<0.000000e+00> : vector<8xf32>
    %78 = vector.multi_reduction <add>, %77, %cst_31 [1] : vector<8x128xf32> to vector<8xf32>
    %79 = vector.shape_cast %78 : vector<8xf32> to vector<8x1xf32>
    %cst_32 = arith.constant 1.280000e+02 : f32
    %80 = vector.broadcast %cst_32 : f32 to vector<8x1xf32>
    %81 = arith.divf %79, %80 : vector<8x1xf32>
    %82 = vector.broadcast %81 : vector<8x1xf32> to vector<8x128xf32>
    %83 = arith.subf %77, %82 : vector<8x128xf32>
    %84 = arith.mulf %83, %83 : vector<8x128xf32>
    %cst_33 = arith.constant dense<0.000000e+00> : vector<8xf32>
    %85 = vector.multi_reduction <add>, %84, %cst_33 [1] : vector<8x128xf32> to vector<8xf32>
    %86 = vector.shape_cast %85 : vector<8xf32> to vector<8x1xf32>
    %cst_34 = arith.constant 1.280000e+02 : f32
    %87 = vector.broadcast %cst_34 : f32 to vector<8x1xf32>
    %88 = arith.divf %86, %87 : vector<8x1xf32>
    %89 = vector.broadcast %81 : vector<8x1xf32> to vector<8x128xf32>
    %90 = arith.subf %77, %89 : vector<8x128xf32>
    %cst_35 = arith.constant 9.99999974E-6 : f32
    %91 = vector.broadcast %cst_35 : f32 to vector<8x1xf32>
    %92 = arith.addf %88, %91 : vector<8x1xf32>
    %93 = math.rsqrt %92 : vector<8x1xf32>
    %94 = vector.broadcast %93 : vector<8x1xf32> to vector<8x128xf32>
    %95 = arith.mulf %90, %94 : vector<8x128xf32>
    %96 = arith.mulf %95, %8 : vector<8x128xf32>
    %97 = arith.addf %96, %11 : vector<8x128xf32>
    %cst_36 = arith.constant dense<0.000000e+00> : vector<8x128xf32>
    %98 = tpu.matmul %97, %15, %cst_36 {dimension_numbers = #tpu.dot_dimension_numbers<[1], [0], [0], [1], [0, 0, 1, 1], [], []>} : vector<8x128xf32>, vector<128x128xf32>, vector<8x128xf32> -> vector<8x128xf32>
    %99 = arith.addf %98, %14 : vector<8x128xf32>
    %cst_37 = arith.constant 5.000000e-01 : f32
    %100 = vector.broadcast %cst_37 : f32 to vector<8x128xf32>
    %101 = arith.mulf %100, %99 : vector<8x128xf32>
    %cst_38 = arith.constant 0.707106769 : f32
    %102 = vector.broadcast %cst_38 : f32 to vector<8x128xf32>
    %103 = arith.mulf %99, %102 : vector<8x128xf32>
    %104 = math.erf %103 : vector<8x128xf32>
    %cst_39 = arith.constant 1.000000e+00 : f32
    %105 = vector.broadcast %cst_39 : f32 to vector<8x128xf32>
    %106 = arith.addf %105, %104 : vector<8x128xf32>
    %107 = arith.mulf %101, %106 : vector<8x128xf32>
    %108 = arith.addf %77, %107 : vector<8x128xf32>
    %c0_40 = arith.constant 0 : index
    %c0_41 = arith.constant 0 : index
    %109 = vector.load %arg8[%c0_40, %c0_41] : memref<128x784xf32, #tpu.memory_space<vmem>>, vector<128x784xf32>
    %cst_42 = arith.constant dense<0.000000e+00> : vector<8x784xf32>
    %110 = tpu.matmul %108, %109, %cst_42 {dimension_numbers = #tpu.dot_dimension_numbers<[1], [0], [0], [1], [0, 0, 1, 1], [], []>} : vector<8x128xf32>, vector<128x784xf32>, vector<8x784xf32> -> vector<8x784xf32>
    %c0_43 = arith.constant 0 : index
    %c0_44 = arith.constant 0 : index
    %111 = vector.load %arg9[%c0_43, %c0_44] : memref<1x784xf32, #tpu.memory_space<vmem>>, vector<1x784xf32>
    %112 = vector.broadcast %111 : vector<1x784xf32> to vector<8x784xf32>
    %113 = arith.addf %110, %112 : vector<8x784xf32>
    %cst_45 = arith.constant 5.000000e-01 : f32
    %114 = vector.broadcast %cst_45 : f32 to vector<8x784xf32>
    %115 = arith.mulf %114, %113 : vector<8x784xf32>
    %116 = math.tanh %115 : vector<8x784xf32>
    %cst_46 = arith.constant 5.000000e-01 : f32
    %117 = vector.broadcast %cst_46 : f32 to vector<8x784xf32>
    %118 = arith.mulf %117, %116 : vector<8x784xf32>
    %cst_47 = arith.constant 5.000000e-01 : f32
    %119 = vector.broadcast %cst_47 : f32 to vector<8x784xf32>
    %120 = arith.addf %118, %119 : vector<8x784xf32>
    %c0_48 = arith.constant 0 : index
    %c0_49 = arith.constant 0 : index
    %121 = vector.load %arg10[%c0_48, %c0_49] : memref<8x784xf32, #tpu.memory_space<vmem>>, vector<8x784xf32>
    tpu.vector_store %arg10[%c0_48, %c0_49], %120 {strides = array<i32>} : memref<8x784xf32, #tpu.memory_space<vmem>>, vector<8x784xf32>,
    return
  }
  func.func @transform_0(%arg0: i32) -> (i32, i32) {
    %c0_i32 = arith.constant 0 : i32
    %c0_i32_0 = arith.constant 0 : i32
    return %arg0, %c0_i32 : i32, i32
  }
  func.func @transform_1(%arg0: i32) -> (i32, i32) {
    %c0_i32 = arith.constant 0 : i32
    %c0_i32_0 = arith.constant 0 : i32
    %c0_i32_1 = arith.constant 0 : i32
    return %c0_i32, %c0_i32_0 : i32, i32
  }
  func.func @transform_2(%arg0: i32) -> (i32, i32) {
    %c0_i32 = arith.constant 0 : i32
    %c0_i32_0 = arith.constant 0 : i32
    %c0_i32_1 = arith.constant 0 : i32
    return %c0_i32, %c0_i32_0 : i32, i32
  }
  func.func @transform_3(%arg0: i32) -> (i32, i32) {
    %c0_i32 = arith.constant 0 : i32
    %c0_i32_0 = arith.constant 0 : i32
    %c0_i32_1 = arith.constant 0 : i32
    return %c0_i32, %c0_i32_0 : i32, i32
  }
  func.func @transform_4(%arg0: i32) -> (i32, i32) {
    %c0_i32 = arith.constant 0 : i32
    %c0_i32_0 = arith.constant 0 : i32
    %c0_i32_1 = arith.constant 0 : i32
    return %c0_i32, %c0_i32_0 : i32, i32
  }
  func.func @transform_5(%arg0: i32) -> (i32, i32) {
    %c0_i32 = arith.constant 0 : i32
    %c0_i32_0 = arith.constant 0 : i32
    %c0_i32_1 = arith.constant 0 : i32
    return %c0_i32, %c0_i32_0 : i32, i32
  }
  func.func @transform_6(%arg0: i32) -> (i32, i32) {
    %c0_i32 = arith.constant 0 : i32
    %c0_i32_0 = arith.constant 0 : i32
    %c0_i32_1 = arith.constant 0 : i32
    return %c0_i32, %c0_i32_0 : i32, i32
  }
  func.func @transform_7(%arg0: i32) -> (i32, i32) {
    %c0_i32 = arith.constant 0 : i32
    %c0_i32_0 = arith.constant 0 : i32
    %c0_i32_1 = arith.constant 0 : i32
    return %c0_i32, %c0_i32_0 : i32, i32
  }
  func.func @transform_8(%arg0: i32) -> (i32, i32) {
    %c0_i32 = arith.constant 0 : i32
    %c0_i32_0 = arith.constant 0 : i32
    %c0_i32_1 = arith.constant 0 : i32
    return %c0_i32, %c0_i32_0 : i32, i32
  }
  func.func @transform_9(%arg0: i32) -> (i32, i32) {
    %c0_i32 = arith.constant 0 : i32
    %c0_i32_0 = arith.constant 0 : i32
    return %arg0, %c0_i32 : i32, i32
  }
}

</mosaic_0001>

<llo_original>
// kernel: _forward_impl.1
$region0: #{_forward_impl.1}
  #allocation0 [shape = 'u32[]', space=smem, size = 0x4, offset = 0x4, fixed_abs, tag = 'smem constant byte address 0x4 - core index']
  #allocation1 [shape = 'u32[144,128]{1,0:T(1,128)}', space=vmem, size = 0x12000, scoped, tag = 'internal scratch']
  %s0 = inlined_call_operand.vmem [shape: f32[8,64], index: 0, kind: input, shape index: {}]
  %s1 = inlined_call_operand.vmem [shape: f32[64,128], index: 1, kind: input, shape index: {}]
  %s2 = inlined_call_operand.vmem [shape: f32[1,128], index: 2, kind: input, shape index: {}]
  %s3 = inlined_call_operand.vmem [shape: f32[1,128], index: 3, kind: input, shape index: {}]
  %s4 = inlined_call_operand.vmem [shape: f32[1,128], index: 4, kind: input, shape index: {}]
  %s5 = inlined_call_operand.vmem [shape: f32[128,128], index: 5, kind: input, shape index: {}]
  %s6 = inlined_call_operand.vmem [shape: f32[1,128], index: 6, kind: input, shape index: {}]
  %s7 = inlined_call_operand.vmem [shape: f32[128,784], index: 7, kind: input, shape index: {}]
  %s8 = inlined_call_operand.vmem [shape: f32[1,784], index: 8, kind: input, shape index: {}]
  %s9 = inlined_call_operand.vmem [shape: f32[8,784], index: 9, kind: output, shape index: {}]
  %s10 = sld [smem:[#allocation0]]
  $region46: #{_forward_impl.1} parent=0
    _
  %s12 = ssub.s32 1, %s10
  %s13 = scalar_select 0, %s12, %s10
  // Predicated region
  $region2: #{_forward_impl.1} parent=0 // pred_check
    _
  $region3: #{_forward_impl.1} parent=0 // pred_check_branch
    %15 = sbr.rel (0) target = $region5
  $region4: #{_forward_impl.1} parent=0 // pred_region
    _
  $region5: #{_forward_impl.1} parent=0 // pred_fallthru
    _
  // Predicated region
  $region6: #{_forward_impl.1} parent=0 // pred_check
    _
  $region7: #{_forward_impl.1} parent=0 // pred_check_branch
    %17 = sbr.rel (0) target = $region9
  $region8: #{_forward_impl.1} parent=0 // pred_region
    _
  $region9: #{_forward_impl.1} parent=0 // pred_fallthru
    _
  // Predicated region
  $region10: #{_forward_impl.1} parent=0 // pred_check
    _
  $region11: #{_forward_impl.1} parent=0 // pred_check_branch
    %19 = sbr.rel (0) target = $region13
  $region12: #{_forward_impl.1} parent=0 // pred_region
    _
  $region13: #{_forward_impl.1} parent=0 // pred_fallthru
    _
  // Predicated region
  $region14: #{_forward_impl.1} parent=0 // pred_check
    _
  $region15: #{_forward_impl.1} parent=0 // pred_check_branch
    %21 = sbr.rel (0) target = $region17
  $region16: #{_forward_impl.1} parent=0 // pred_region
    _
  $region17: #{_forward_impl.1} parent=0 // pred_fallthru
    _
  // Predicated region
  $region18: #{_forward_impl.1} parent=0 // pred_check
    _
  $region19: #{_forward_impl.1} parent=0 // pred_check_branch
    %23 = sbr.rel (0) target = $region21
  $region20: #{_forward_impl.1} parent=0 // pred_region
    _
  $region21: #{_forward_impl.1} parent=0 // pred_fallthru
    _
  // Predicated region
  $region22: #{_forward_impl.1} parent=0 // pred_check
    _
  $region23: #{_forward_impl.1} parent=0 // pred_check_branch
    %25 = sbr.rel (0) target = $region25
  $region24: #{_forward_impl.1} parent=0 // pred_region
    _
  $region25: #{_forward_impl.1} parent=0 // pred_fallthru
    _
  // Predicated region
  $region26: #{_forward_impl.1} parent=0 // pred_check
    _
  $region27: #{_forward_impl.1} parent=0 // pred_check_branch
    %27 = sbr.rel (0) target = $region29
  $region28: #{_forward_impl.1} parent=0 // pred_region
    _
  $region29: #{_forward_impl.1} parent=0 // pred_fallthru
    _
  // Predicated region
  $region30: #{_forward_impl.1} parent=0 // pred_check
    _
  $region31: #{_forward_impl.1} parent=0 // pred_check_branch
    %29 = sbr.rel (0) target = $region33
  $region32: #{_forward_impl.1} parent=0 // pred_region
    _
  $region33: #{_forward_impl.1} parent=0 // pred_fallthru
    _
  // Predicated region
  $region34: #{_forward_impl.1} parent=0 // pred_check
    _
  $region35: #{_forward_impl.1} parent=0 // pred_check_branch
    %31 = sbr.rel (0) target = $region37
  $region36: #{_forward_impl.1} parent=0 // pred_region
    _
  $region37: #{_forward_impl.1} parent=0 // pred_fallthru
    _
  %v32 = vld [vmem:[%s0] sm:$0xff]
  %v33 = vld [vmem:[%s1] sm:$0xff]
  %v34 = vld [vmem:[%s1 + $0x8] sm:$0xff]
  %v35 = vld [vmem:[%s1 + $0x10] sm:$0xff]
  %v36 = vld [vmem:[%s1 + $0x18] sm:$0xff]
  %v37 = vld [vmem:[%s1 + $0x20] sm:$0xff]
  %v38 = vld [vmem:[%s1 + $0x28] sm:$0xff]
  %v39 = vld [vmem:[%s1 + $0x30] sm:$0xff]
  %v40 = vld [vmem:[%s1 + $0x38] sm:$0xff]
  %v41 = vld [vmem:[%s2] sm:$0x1]
  %v43 = vlaneseq
  %v44 = vshrl.u32 %v43, 7
  %v45 = vsub.s32 0, %v44
  %v46 = vrot.slane %v41, %v45
  %vm48 = vcmask 523264
  %v50 = vsel %vm48, %v32, 0
  %52 = vmatprep.subr.mxu0 0.0
  %53 = vmatpush1.msra.mxu0 %v33
  %54 = vmatprep.subr.mxu0 0.0
  %55 = vmatpush1.msra.mxu0 %v34
  %56 = vmatprep.subr.mxu0 0.0
  %57 = vmatpush1.msra.mxu0 %v35
  %58 = vmatprep.subr.mxu0 0.0
  %59 = vmatpush1.msra.mxu0 %v36
  %60 = vmatprep.subr.mxu0 0.0
  %61 = vmatpush1.msra.mxu0 %v37
  %62 = vmatprep.subr.mxu0 0.0
  %63 = vmatpush1.msra.mxu0 %v38
  %64 = vmatprep.subr.mxu0 0.0
  %65 = vmatpush1.msra.mxu0 %v39
  %66 = vmatprep.subr.mxu0 0.0
  %67 = vmatpush1.msra.mxu0 %v40
  %68 = vmatprep.subr.mxu0 0.0
  %69 = vmatpush1.msra.mxu0 0.0
  %70 = vmatprep.subr.mxu0 0.0
  %71 = vmatpush1.msra.mxu0 0.0
  %72 = vmatprep.subr.mxu0 0.0
  %73 = vmatpush1.msra.mxu0 0.0
  %74 = vmatprep.subr.mxu0 0.0
  %75 = vmatpush1.msra.mxu0 0.0
  %76 = vmatprep.subr.mxu0 0.0
  %77 = vmatpush1.msra.mxu0 0.0
  %78 = vmatprep.subr.mxu0 0.0
  %79 = vmatpush1.msra.mxu0 0.0
  %80 = vmatprep.subr.mxu0 0.0
  %81 = vmatpush1.msra.mxu0 0.0
  %82 = vmatprep.subr.mxu0 0.0
  %83 = vmatpush1.msra.mxu0 0.0
  %84 = vmatprep.subr.mxu0 0.0
  %85 = vmatpush1.msra.mxu0 0.0
  %86 = vmatprep.subr.mxu0 0.0
  %87 = vmatpush1.msra.mxu0 0.0
  %88 = vmatprep.subr.mxu0 0.0
  %89 = vmatpush1.msra.mxu0 0.0
  %90 = vmatprep.subr.mxu0 0.0
  %91 = vmatpush1.msra.mxu0 0.0
  %92 = vmatprep.subr.mxu0 0.0
  %93 = vmatpush1.msra.mxu0 0.0
  %94 = vmatprep.subr.mxu0 0.0
  %95 = vmatpush1.msra.mxu0 0.0
  %96 = vmatprep.subr.mxu0 0.0
  %97 = vmatpush1.msra.mxu0 0.0
  %98 = vmatprep.subr.mxu0 0.0
  %99 = vmatpush1.msra.mxu0 0.0
  %100 = vmatprep.subr.mxu0 0.0
  %101 = vmatpush1.msra.mxu0 0.0
  %102 = vmatprep.subr.mxu0 0.0
  %103 = vmatpush1.msra.mxu0 0.0
  %104 = vmatprep.subr.mxu0 0.0
  %105 = vmatpush1.msra.mxu0 0.0
  %106 = vmatprep.subr.mxu0 0.0
  %107 = vmatpush1.msra.mxu0 0.0
  %108 = vmatprep.subr.mxu0 0.0
  %109 = vmatpush1.msra.mxu0 0.0
  %110 = vmatprep.subr.mxu0 0.0
  %111 = vmatpush1.msra.mxu0 0.0
  %112 = vmatprep.subr.mxu0 0.0
  %113 = vmatpush1.msra.mxu0 0.0
  %114 = vmatprep.subr.mxu0 0.0
  %115 = vmatpush1.msra.mxu0 0.0
  %116 = vmatprep.mubr.f32.mxu0 0.0
  %117 = vmatmul.mubr.f32.gmra.mrb[0].mxu0 %v50
  %v118 = vpop.f32.mrb[0].mxu0
  %v119 = vadd.f32 %v46, %v118
  %v120 = vpop.f32.mrb[0].mxu0
  %121 = vdwg.mxu0
  %v122 = vld [vmem:[%s3] sm:$0x1]
  %v124 = vlaneseq
  %v125 = vshrl.u32 %v124, 7
  %v126 = vsub.s32 0, %v125
  %v127 = vrot.slane %v122, %v126
  %v129 = vld [vmem:[%s4] sm:$0x1]
  %v131 = vlaneseq
  %v132 = vshrl.u32 %v131, 7
  %v133 = vsub.s32 0, %v132
  %v134 = vrot.slane %v129, %v133
  %v136 = vld [vmem:[%s6] sm:$0x1]
  %v138 = vlaneseq
  %v139 = vshrl.u32 %v138, 7
  %v140 = vsub.s32 0, %v139
  %v141 = vrot.slane %v136, %v140
  %v143 = vld [vmem:[%s5] sm:$0xff]
  %v144 = vld [vmem:[%s5 + $0x8] sm:$0xff]
  %v145 = vld [vmem:[%s5 + $0x10] sm:$0xff]
  %v146 = vld [vmem:[%s5 + $0x18] sm:$0xff]
  %v147 = vld [vmem:[%s5 + $0x20] sm:$0xff]
  %v148 = vld [vmem:[%s5 + $0x28] sm:$0xff]
  %v149 = vld [vmem:[%s5 + $0x30] sm:$0xff]
  %v150 = vld [vmem:[%s5 + $0x38] sm:$0xff]
  %v151 = vld [vmem:[%s5 + $0x40] sm:$0xff]
  %v152 = vld [vmem:[%s5 + $0x48] sm:$0xff]
  %v153 = vld [vmem:[%s5 + $0x50] sm:$0xff]
  %v154 = vld [vmem:[%s5 + $0x58] sm:$0xff]
  %v155 = vld [vmem:[%s5 + $0x60] sm:$0xff]
  %v156 = vld [vmem:[%s5 + $0x68] sm:$0xff]
  %v157 = vld [vmem:[%s5 + $0x70] sm:$0xff]
  %v158 = vld [vmem:[%s5 + $0x78] sm:$0xff]
  %159 = vadd.xlane.f32.xlu0 %v119
  %v160 = vpop.xlane.xlu0 %159
  %v161 = vrcp.pop 128.0
  %v162 = vmul.f32 %v160, %v161
  %v163 = vsub.f32 %v119, %v162
  %v164 = vmul.f32 %v163, %v163
  %165 = vadd.xlane.f32.xlu0 %v164
  %v166 = vpop.xlane.xlu0 %165
  %v167 = vmul.f32 %v166, %v161
  %v168 = vadd.f32 %v167, 1e-05
  %v169 = vrsqrt.pop %v168
  %v170 = vmul.f32 %v163, %v169
  %v171 = vmul.f32 %v170, %v127
  %v172 = vadd.f32 %v171, %v134
  %173 = vmatprep.subr.mxu0 0.0
  %174 = vmatpush1.msra.mxu0 %v143
  %175 = vmatprep.subr.mxu0 0.0
  %176 = vmatpush1.msra.mxu0 %v144
  %177 = vmatprep.subr.mxu0 0.0
  %178 = vmatpush1.msra.mxu0 %v145
  %179 = vmatprep.subr.mxu0 0.0
  %180 = vmatpush1.msra.mxu0 %v146
  %181 = vmatprep.subr.mxu0 0.0
  %182 = vmatpush1.msra.mxu0 %v147
  %183 = vmatprep.subr.mxu0 0.0
  %184 = vmatpush1.msra.mxu0 %v148
  %185 = vmatprep.subr.mxu0 0.0
  %186 = vmatpush1.msra.mxu0 %v149
  %187 = vmatprep.subr.mxu0 0.0
  %188 = vmatpush1.msra.mxu0 %v150
  %189 = vmatprep.subr.mxu0 0.0
  %190 = vmatpush1.msra.mxu0 %v151
  %191 = vmatprep.subr.mxu0 0.0
  %192 = vmatpush1.msra.mxu0 %v152
  %193 = vmatprep.subr.mxu0 0.0
  %194 = vmatpush1.msra.mxu0 %v153
  %195 = vmatprep.subr.mxu0 0.0
  %196 = vmatpush1.msra.mxu0 %v154
  %197 = vmatprep.subr.mxu0 0.0
  %198 = vmatpush1.msra.mxu0 %v155
  %199 = vmatprep.subr.mxu0 0.0
  %200 = vmatpush1.msra.mxu0 %v156
  %201 = vmatprep.subr.mxu0 0.0
  %202 = vmatpush1.msra.mxu0 %v157
  %203 = vmatprep.subr.mxu0 0.0
  %204 = vmatpush1.msra.mxu0 %v158
  %205 = vmatprep.subr.mxu0 0.0
  %206 = vmatpush1.msra.mxu0 0.0
  %207 = vmatprep.subr.mxu0 0.0
  %208 = vmatpush1.msra.mxu0 0.0
  %209 = vmatprep.subr.mxu0 0.0
  %210 = vmatpush1.msra.mxu0 0.0
  %211 = vmatprep.subr.mxu0 0.0
  %212 = vmatpush1.msra.mxu0 0.0
  %213 = vmatprep.subr.mxu0 0.0
  %214 = vmatpush1.msra.mxu0 0.0
  %215 = vmatprep.subr.mxu0 0.0
  %216 = vmatpush1.msra.mxu0 0.0
  %217 = vmatprep.subr.mxu0 0.0
  %218 = vmatpush1.msra.mxu0 0.0
  %219 = vmatprep.subr.mxu0 0.0
  %220 = vmatpush1.msra.mxu0 0.0
  %221 = vmatprep.subr.mxu0 0.0
  %222 = vmatpush1.msra.mxu0 0.0
  %223 = vmatprep.subr.mxu0 0.0
  %224 = vmatpush1.msra.mxu0 0.0
  %225 = vmatprep.subr.mxu0 0.0
  %226 = vmatpush1.msra.mxu0 0.0
  %227 = vmatprep.subr.mxu0 0.0
  %228 = vmatpush1.msra.mxu0 0.0
  %229 = vmatprep.subr.mxu0 0.0
  %230 = vmatpush1.msra.mxu0 0.0
  %231 = vmatprep.subr.mxu0 0.0
  %232 = vmatpush1.msra.mxu0 0.0
  %233 = vmatprep.subr.mxu0 0.0
  %234 = vmatpush1.msra.mxu0 0.0
  %235 = vmatprep.subr.mxu0 0.0
  %236 = vmatpush1.msra.mxu0 0.0
  %237 = vmatprep.mubr.f32.mxu0 0.0
  %238 = vmatmul.mubr.f32.gmra.mrb[0].mxu0 %v172
  %v239 = vpop.f32.mrb[0].mxu0
  %v240 = vadd.f32 %v141, %v239
  %v241 = vpop.f32.mrb[0].mxu0
  %242 = vdwg.mxu0
  %v243 = vmul.f32 %v240, 0.5
  %v244 = vmul.f32 %v240, 0.70710677
  %v245 = verf.f32.pop %v244
  %v246 = vadd.f32 %v245, 1.0
  %v247 = vmul.f32 %v243, %v246
  %v248 = vadd.f32 %v119, %v247
  %249 = vadd.xlane.f32.xlu0 %v248
  %v250 = vpop.xlane.xlu0 %249
  %v251 = vmul.f32 %v250, %v161
  %v252 = vsub.f32 %v248, %v251
  %v253 = vmul.f32 %v252, %v252
  %254 = vadd.xlane.f32.xlu0 %v253
  %v255 = vpop.xlane.xlu0 %254
  %v256 = vmul.f32 %v255, %v161
  %v257 = vadd.f32 %v256, 1e-05
  %v258 = vrsqrt.pop %v257
  %v259 = vmul.f32 %v252, %v258
  %v260 = vmul.f32 %v259, %v127
  %v261 = vadd.f32 %v260, %v134
  %262 = vmatprep.subr.mxu0 0.0
  %263 = vmatpush1.msra.mxu0 %v143
  %264 = vmatprep.subr.mxu0 0.0
  %265 = vmatpush1.msra.mxu0 %v144
  %266 = vmatprep.subr.mxu0 0.0
  %267 = vmatpush1.msra.mxu0 %v145
  %268 = vmatprep.subr.mxu0 0.0
  %269 = vmatpush1.msra.mxu0 %v146
  %270 = vmatprep.subr.mxu0 0.0
  %271 = vmatpush1.msra.mxu0 %v147
  %272 = vmatprep.subr.mxu0 0.0
  %273 = vmatpush1.msra.mxu0 %v148
  %274 = vmatprep.subr.mxu0 0.0
  %275 = vmatpush1.msra.mxu0 %v149
  %276 = vmatprep.subr.mxu0 0.0
  %277 = vmatpush1.msra.mxu0 %v150
  %278 = vmatprep.subr.mxu0 0.0
  %279 = vmatpush1.msra.mxu0 %v151
  %280 = vmatprep.subr.mxu0 0.0
  %281 = vmatpush1.msra.mxu0 %v152
  %282 = vmatprep.subr.mxu0 0.0
  %283 = vmatpush1.msra.mxu0 %v153
  %284 = vmatprep.subr.mxu0 0.0
  %285 = vmatpush1.msra.mxu0 %v154
  %286 = vmatprep.subr.mxu0 0.0
  %287 = vmatpush1.msra.mxu0 %v155
  %288 = vmatprep.subr.mxu0 0.0
  %289 = vmatpush1.msra.mxu0 %v156
  %290 = vmatprep.subr.mxu0 0.0
  %291 = vmatpush1.msra.mxu0 %v157
  %292 = vmatprep.subr.mxu0 0.0
  %293 = vmatpush1.msra.mxu0 %v158
  %294 = vmatprep.subr.mxu0 0.0
  %295 = vmatpush1.msra.mxu0 0.0
  %296 = vmatprep.subr.mxu0 0.0
  %297 = vmatpush1.msra.mxu0 0.0
  %298 = vmatprep.subr.mxu0 0.0
  %299 = vmatpush1.msra.mxu0 0.0
  %300 = vmatprep.subr.mxu0 0.0
  %301 = vmatpush1.msra.mxu0 0.0
  %302 = vmatprep.subr.mxu0 0.0
  %303 = vmatpush1.msra.mxu0 0.0
  %304 = vmatprep.subr.mxu0 0.0
  %305 = vmatpush1.msra.mxu0 0.0
  %306 = vmatprep.subr.mxu0 0.0
  %307 = vmatpush1.msra.mxu0 0.0
  %308 = vmatprep.subr.mxu0 0.0
  %309 = vmatpush1.msra.mxu0 0.0
  %310 = vmatprep.subr.mxu0 0.0
  %311 = vmatpush1.msra.mxu0 0.0
  %312 = vmatprep.subr.mxu0 0.0
  %313 = vmatpush1.msra.mxu0 0.0
  %314 = vmatprep.subr.mxu0 0.0
  %315 = vmatpush1.msra.mxu0 0.0
  %316 = vmatprep.subr.mxu0 0.0
  %317 = vmatpush1.msra.mxu0 0.0
  %318 = vmatprep.subr.mxu0 0.0
  %319 = vmatpush1.msra.mxu0 0.0
  %320 = vmatprep.subr.mxu0 0.0
  %321 = vmatpush1.msra.mxu0 0.0
  %322 = vmatprep.subr.mxu0 0.0
  %323 = vmatpush1.msra.mxu0 0.0
  %324 = vmatprep.subr.mxu0 0.0
  %325 = vmatpush1.msra.mxu0 0.0
  %326 = vmatprep.mubr.f32.mxu0 0.0
  %327 = vmatmul.mubr.f32.gmra.mrb[0].mxu0 %v261
  %v328 = vpop.f32.mrb[0].mxu0
  %v329 = vadd.f32 %v141, %v328
  %v330 = vpop.f32.mrb[0].mxu0
  %331 = vdwg.mxu0
  %v332 = vmul.f32 %v329, 0.5
  %v333 = vmul.f32 %v329, 0.70710677
  %v334 = verf.f32.pop %v333
  %v335 = vadd.f32 %v334, 1.0
  %v336 = vmul.f32 %v332, %v335
  %v337 = vadd.f32 %v248, %v336
  %338 = vadd.xlane.f32.xlu0 %v337
  %v339 = vpop.xlane.xlu0 %338
  %v340 = vmul.f32 %v339, %v161
  %v341 = vsub.f32 %v337, %v340
  %v342 = vmul.f32 %v341, %v341
  %343 = vadd.xlane.f32.xlu0 %v342
  %v344 = vpop.xlane.xlu0 %343
  %v345 = vmul.f32 %v344, %v161
  %v346 = vadd.f32 %v345, 1e-05
  %v347 = vrsqrt.pop %v346
  %v348 = vmul.f32 %v341, %v347
  %v349 = vmul.f32 %v348, %v127
  %v350 = vadd.f32 %v349, %v134
  %351 = vmatprep.subr.mxu0 0.0
  %352 = vmatpush1.msra.mxu0 %v143
  %353 = vmatprep.subr.mxu0 0.0
  %354 = vmatpush1.msra.mxu0 %v144
  %355 = vmatprep.subr.mxu0 0.0
  %356 = vmatpush1.msra.mxu0 %v145
  %357 = vmatprep.subr.mxu0 0.0
  %358 = vmatpush1.msra.mxu0 %v146
  %359 = vmatprep.subr.mxu0 0.0
  %360 = vmatpush1.msra.mxu0 %v147
  %361 = vmatprep.subr.mxu0 0.0
  %362 = vmatpush1.msra.mxu0 %v148
  %363 = vmatprep.subr.mxu0 0.0
  %364 = vmatpush1.msra.mxu0 %v149
  %365 = vmatprep.subr.mxu0 0.0
  %366 = vmatpush1.msra.mxu0 %v150
  %367 = vmatprep.subr.mxu0 0.0
  %368 = vmatpush1.msra.mxu0 %v151
  %369 = vmatprep.subr.mxu0 0.0
  %370 = vmatpush1.msra.mxu0 %v152
  %371 = vmatprep.subr.mxu0 0.0
  %372 = vmatpush1.msra.mxu0 %v153
  %373 = vmatprep.subr.mxu0 0.0
  %374 = vmatpush1.msra.mxu0 %v154
  %375 = vmatprep.subr.mxu0 0.0
  %376 = vmatpush1.msra.mxu0 %v155
  %377 = vmatprep.subr.mxu0 0.0
  %378 = vmatpush1.msra.mxu0 %v156
  %379 = vmatprep.subr.mxu0 0.0
  %380 = vmatpush1.msra.mxu0 %v157
  %381 = vmatprep.subr.mxu0 0.0
  %382 = vmatpush1.msra.mxu0 %v158
  %383 = vmatprep.subr.mxu0 0.0
  %384 = vmatpush1.msra.mxu0 0.0
  %385 = vmatprep.subr.mxu0 0.0
  %386 = vmatpush1.msra.mxu0 0.0
  %387 = vmatprep.subr.mxu0 0.0
  %388 = vmatpush1.msra.mxu0 0.0
  %389 = vmatprep.subr.mxu0 0.0
  %390 = vmatpush1.msra.mxu0 0.0
  %391 = vmatprep.subr.mxu0 0.0
  %392 = vmatpush1.msra.mxu0 0.0
  %393 = vmatprep.subr.mxu0 0.0
  %394 = vmatpush1.msra.mxu0 0.0
  %395 = vmatprep.subr.mxu0 0.0
  %396 = vmatpush1.msra.mxu0 0.0
  %397 = vmatprep.subr.mxu0 0.0
  %398 = vmatpush1.msra.mxu0 0.0
  %399 = vmatprep.subr.mxu0 0.0
  %400 = vmatpush1.msra.mxu0 0.0
  %401 = vmatprep.subr.mxu0 0.0
  %402 = vmatpush1.msra.mxu0 0.0
  %403 = vmatprep.subr.mxu0 0.0
  %404 = vmatpush1.msra.mxu0 0.0
  %405 = vmatprep.subr.mxu0 0.0
  %406 = vmatpush1.msra.mxu0 0.0
  %407 = vmatprep.subr.mxu0 0.0
  %408 = vmatpush1.msra.mxu0 0.0
  %409 = vmatprep.subr.mxu0 0.0
  %410 = vmatpush1.msra.mxu0 0.0
  %411 = vmatprep.subr.mxu0 0.0
  %412 = vmatpush1.msra.mxu0 0.0
  %413 = vmatprep.subr.mxu0 0.0
  %414 = vmatpush1.msra.mxu0 0.0
  %415 = vmatprep.mubr.f32.mxu0 0.0
  %416 = vmatmul.mubr.f32.gmra.mrb[0].mxu0 %v350
  %v417 = vpop.f32.mrb[0].mxu0
  %v418 = vadd.f32 %v141, %v417
  %v419 = vpop.f32.mrb[0].mxu0
  %420 = vdwg.mxu0
  %v421 = vmul.f32 %v418, 0.5
  %v422 = vmul.f32 %v418, 0.70710677
  %v423 = verf.f32.pop %v422
  %v424 = vadd.f32 %v423, 1.0
  %v425 = vmul.f32 %v421, %v424
  %v426 = vadd.f32 %v337, %v425
  %v427 = vld [vmem:[%s7] sm:$0xff]
  %v428 = vld [vmem:[%s7 + $0x8] sm:$0xff]
  %v429 = vld [vmem:[%s7 + $0x10] sm:$0xff]
  %v430 = vld [vmem:[%s7 + $0x18] sm:$0xff]
  %v431 = vld [vmem:[%s7 + $0x20] sm:$0xff]
  %v432 = vld [vmem:[%s7 + $0x28] sm:$0xff]
  %v433 = vld [vmem:[%s7 + $0x30] sm:$0xff]
  %v434 = vld [vmem:[%s7 + $0x38] sm:$0xff]
  %v435 = vld [vmem:[%s7 + $0x40] sm:$0xff]
  %v436 = vld [vmem:[%s7 + $0x48] sm:$0xff]
  %v437 = vld [vmem:[%s7 + $0x50] sm:$0xff]
  %v438 = vld [vmem:[%s7 + $0x58] sm:$0xff]
  %v439 = vld [vmem:[%s7 + $0x60] sm:$0xff]
  %v440 = vld [vmem:[%s7 + $0x68] sm:$0xff]
  %v441 = vld [vmem:[%s7 + $0x70] sm:$0xff]
  %v442 = vld [vmem:[%s7 + $0x78] sm:$0xff]
  %v443 = vld [vmem:[%s7 + $0x80] sm:$0xff]
  %v444 = vld [vmem:[%s7 + $0x88] sm:$0xff]
  %v445 = vld [vmem:[%s7 + $0x90] sm:$0xff]
  %v446 = vld [vmem:[%s7 + $0x98] sm:$0xff]
  %v447 = vld [vmem:[%s7 + $0xa0] sm:$0xff]
  %v448 = vld [vmem:[%s7 + $0xa8] sm:$0xff]
  %v449 = vld [vmem:[%s7 + $0xb0] sm:$0xff]
  %v450 = vld [vmem:[%s7 + $0xb8] sm:$0xff]
  %v451 = vld [vmem:[%s7 + $0xc0] sm:$0xff]
  %v452 = vld [vmem:[%s7 + $0xc8] sm:$0xff]
  %v453 = vld [vmem:[%s7 + $0xd0] sm:$0xff]
  %v454 = vld [vmem:[%s7 + $0xd8] sm:$0xff]
  %v455 = vld [vmem:[%s7 + $0xe0] sm:$0xff]
  %v456 = vld [vmem:[%s7 + $0xe8] sm:$0xff]
  %v457 = vld [vmem:[%s7 + $0xf0] sm:$0xff]
  %v458 = vld [vmem:[%s7 + $0xf8] sm:$0xff]
  %v459 = vld [vmem:[%s7 + $0x100] sm:$0xff]
  %v460 = vld [vmem:[%s7 + $0x108] sm:$0xff]
  %v461 = vld [vmem:[%s7 + $0x110] sm:$0xff]
  %v462 = vld [vmem:[%s7 + $0x118] sm:$0xff]
  %v463 = vld [vmem:[%s7 + $0x120] sm:$0xff]
  %v464 = vld [vmem:[%s7 + $0x128] sm:$0xff]
  %v465 = vld [vmem:[%s7 + $0x130] sm:$0xff]
  %v466 = vld [vmem:[%s7 + $0x138] sm:$0xff]
  %v467 = vld [vmem:[%s7 + $0x140] sm:$0xff]
  %v468 = vld [vmem:[%s7 + $0x148] sm:$0xff]
  %v469 = vld [vmem:[%s7 + $0x150] sm:$0xff]
  %v470 = vld [vmem:[%s7 + $0x158] sm:$0xff]
  %v471 = vld [vmem:[%s7 + $0x160] sm:$0xff]
  %v472 = vld [vmem:[%s7 + $0x168] sm:$0xff]
  %v473 = vld [vmem:[%s7 + $0x170] sm:$0xff]
  %v474 = vld [vmem:[%s7 + $0x178] sm:$0xff]
  %v475 = vld [vmem:[%s7 + $0x180] sm:$0xff]
  %v476 = vld [vmem:[%s7 + $0x188] sm:$0xff]
  %v477 = vld [vmem:[%s7 + $0x190] sm:$0xff]
  %v478 = vld [vmem:[%s7 + $0x198] sm:$0xff]
  %v479 = vld [vmem:[%s7 + $0x1a0] sm:$0xff]
  %v480 = vld [vmem:[%s7 + $0x1a8] sm:$0xff]
  %v481 = vld [vmem:[%s7 + $0x1b0] sm:$0xff]
  %v482 = vld [vmem:[%s7 + $0x1b8] sm:$0xff]
  %v483 = vld [vmem:[%s7 + $0x1c0] sm:$0xff]
  %v484 = vld [vmem:[%s7 + $0x1c8] sm:$0xff]
  %v485 = vld [vmem:[%s7 + $0x1d0] sm:$0xff]
  %v486 = vld [vmem:[%s7 + $0x1d8] sm:$0xff]
  %v487 = vld [vmem:[%s7 + $0x1e0] sm:$0xff]
  %v488 = vld [vmem:[%s7 + $0x1e8] sm:$0xff]
  %v489 = vld [vmem:[%s7 + $0x1f0] sm:$0xff]
  %v490 = vld [vmem:[%s7 + $0x1f8] sm:$0xff]
  %v491 = vld [vmem:[%s7 + $0x200] sm:$0xff]
  %v492 = vld [vmem:[%s7 + $0x208] sm:$0xff]
  %v493 = vld [vmem:[%s7 + $0x210] sm:$0xff]
  %v494 = vld [vmem:[%s7 + $0x218] sm:$0xff]
  %v495 = vld [vmem:[%s7 + $0x220] sm:$0xff]
  %v496 = vld [vmem:[%s7 + $0x228] sm:$0xff]
  %v497 = vld [vmem:[%s7 + $0x230] sm:$0xff]
  %v498 = vld [vmem:[%s7 + $0x238] sm:$0xff]
  %v499 = vld [vmem:[%s7 + $0x240] sm:$0xff]
  %v500 = vld [vmem:[%s7 + $0x248] sm:$0xff]
  %v501 = vld [vmem:[%s7 + $0x250] sm:$0xff]
  %v502 = vld [vmem:[%s7 + $0x258] sm:$0xff]
  %v503 = vld [vmem:[%s7 + $0x260] sm:$0xff]
  %v504 = vld [vmem:[%s7 + $0x268] sm:$0xff]
  %v505 = vld [vmem:[%s7 + $0x270] sm:$0xff]
  %v506 = vld [vmem:[%s7 + $0x278] sm:$0xff]
  %v507 = vld [vmem:[%s7 + $0x280] sm:$0xff]
  %v508 = vld [vmem:[%s7 + $0x288] sm:$0xff]
  %v509 = vld [vmem:[%s7 + $0x290] sm:$0xff]
  %v510 = vld [vmem:[%s7 + $0x298] sm:$0xff]
  %v511 = vld [vmem:[%s7 + $0x2a0] sm:$0xff]
  %v512 = vld [vmem:[%s7 + $0x2a8] sm:$0xff]
  %v513 = vld [vmem:[%s7 + $0x2b0] sm:$0xff]
  %v514 = vld [vmem:[%s7 + $0x2b8] sm:$0xff]
  %v515 = vld [vmem:[%s7 + $0x2c0] sm:$0xff]
  %v516 = vld [vmem:[%s7 + $0x2c8] sm:$0xff]
  %v517 = vld [vmem:[%s7 + $0x2d0] sm:$0xff]
  %v518 = vld [vmem:[%s7 + $0x2d8] sm:$0xff]
  %v519 = vld [vmem:[%s7 + $0x2e0] sm:$0xff]
  %v520 = vld [vmem:[%s7 + $0x2e8] sm:$0xff]
  %v521 = vld [vmem:[%s7 + $0x2f0] sm:$0xff]
  %v522 = vld [vmem:[%s7 + $0x2f8] sm:$0xff]
  %v523 = vld [vmem:[%s7 + $0x300] sm:$0xff]
  %v524 = vld [vmem:[%s7 + $0x308] sm:$0xff]
  %v525 = vld [vmem:[%s7 + $0x310] sm:$0xff]
  %v526 = vld [vmem:[%s7 + $0x318] sm:$0xff]
  %v527 = vld [vmem:[%s7 + $0x320] sm:$0xff]
  %v528 = vld [vmem:[%s7 + $0x328] sm:$0xff]
  %v529 = vld [vmem:[%s7 + $0x330] sm:$0xff]
  %v530 = vld [vmem:[%s7 + $0x338] sm:$0xff]
  %v531 = vld [vmem:[%s7 + $0x340] sm:$0xff]
  %v532 = vld [vmem:[%s7 + $0x348] sm:$0xff]
  %v533 = vld [vmem:[%s7 + $0x350] sm:$0xff]
  %v534 = vld [vmem:[%s7 + $0x358] sm:$0xff]
  %v535 = vld [vmem:[%s7 + $0x360] sm:$0xff]
  %v536 = vld [vmem:[%s7 + $0x368] sm:$0xff]
  %v537 = vld [vmem:[%s7 + $0x370] sm:$0xff]
  %v538 = vld [vmem:[%s7 + $0x378] sm:$0xff]
  %v539 = vld [vmem:[%s8] sm:$0x7f]
  %v541 = vlaneseq
  %v542 = vshrl.u32 %v541, 7
  %v543 = vsub.s32 0, %v542
  %v544 = vrot.slane %v539, %v543
  %v545 = vlaneseq
  %v546 = vshrl.u32 %v545, 7
  %v547 = vsub.s32 1, %v546
  %v548 = vrot.slane %v539, %v547
  %v549 = vlaneseq
  %v550 = vshrl.u32 %v549, 7
  %v551 = vsub.s32 2, %v550
  %v552 = vrot.slane %v539, %v551
  %v553 = vlaneseq
  %v554 = vshrl.u32 %v553, 7
  %v555 = vsub.s32 3, %v554
  %v556 = vrot.slane %v539, %v555
  %v557 = vlaneseq
  %v558 = vshrl.u32 %v557, 7
  %v559 = vsub.s32 4, %v558
  %v560 = vrot.slane %v539, %v559
  %v561 = vlaneseq
  %v562 = vshrl.u32 %v561, 7
  %v563 = vsub.s32 5, %v562
  %v564 = vrot.slane %v539, %v563
  %v565 = vlaneseq
  %v566 = vshrl.u32 %v565, 7
  %v567 = vsub.s32 6, %v566
  %v568 = vrot.slane %v539, %v567
  %576 = vmatprep.subr.mxu0 %v428
  %577 = vmatpush1.msra.mxu0 %v427
  %578 = vmatprep.subr.mxu0 %v435
  %579 = vmatpush1.msra.mxu0 %v434
  %580 = vmatprep.subr.mxu0 %v442
  %581 = vmatpush1.msra.mxu0 %v441
  %582 = vmatprep.subr.mxu0 %v449
  %583 = vmatpush1.msra.mxu0 %v448
  %584 = vmatprep.subr.mxu0 %v456
  %585 = vmatpush1.msra.mxu0 %v455
  %586 = vmatprep.subr.mxu0 %v463
  %587 = vmatpush1.msra.mxu0 %v462
  %588 = vmatprep.subr.mxu0 %v470
  %589 = vmatpush1.msra.mxu0 %v469
  %590 = vmatprep.subr.mxu0 %v477
  %591 = vmatpush1.msra.mxu0 %v476
  %592 = vmatprep.subr.mxu0 %v484
  %593 = vmatpush1.msra.mxu0 %v483
  %594 = vmatprep.subr.mxu0 %v491
  %595 = vmatpush1.msra.mxu0 %v490
  %596 = vmatprep.subr.mxu0 %v498
  %597 = vmatpush1.msra.mxu0 %v497
  %598 = vmatprep.subr.mxu0 %v505
  %599 = vmatpush1.msra.mxu0 %v504
  %600 = vmatprep.subr.mxu0 %v512
  %601 = vmatpush1.msra.mxu0 %v511
  %602 = vmatprep.subr.mxu0 %v519
  %603 = vmatpush1.msra.mxu0 %v518
  %604 = vmatprep.subr.mxu0 %v526
  %605 = vmatpush1.msra.mxu0 %v525
  %606 = vmatprep.subr.mxu0 %v533
  %607 = vmatpush1.msra.mxu0 %v532
  %608 = vmatprep.subr.mxu0 0.0
  %609 = vmatpush1.msra.mxu0 0.0
  %610 = vmatprep.subr.mxu0 0.0
  %611 = vmatpush1.msra.mxu0 0.0
  %612 = vmatprep.subr.mxu0 0.0
  %613 = vmatpush1.msra.mxu0 0.0
  %614 = vmatprep.subr.mxu0 0.0
  %615 = vmatpush1.msra.mxu0 0.0
  %616 = vmatprep.subr.mxu0 0.0
  %617 = vmatpush1.msra.mxu0 0.0
  %618 = vmatprep.subr.mxu0 0.0
  %619 = vmatpush1.msra.mxu0 0.0
  %620 = vmatprep.subr.mxu0 0.0
  %621 = vmatpush1.msra.mxu0 0.0
  %622 = vmatprep.subr.mxu0 0.0
  %623 = vmatpush1.msra.mxu0 0.0
  %624 = vmatprep.subr.mxu0 0.0
  %625 = vmatpush1.msra.mxu0 0.0
  %626 = vmatprep.subr.mxu0 0.0
  %627 = vmatpush1.msra.mxu0 0.0
  %628 = vmatprep.subr.mxu0 0.0
  %629 = vmatpush1.msra.mxu0 0.0
  %630 = vmatprep.subr.mxu0 0.0
  %631 = vmatpush1.msra.mxu0 0.0
  %632 = vmatprep.subr.mxu0 0.0
  %633 = vmatpush1.msra.mxu0 0.0
  %634 = vmatprep.subr.mxu0 0.0
  %635 = vmatpush1.msra.mxu0 0.0
  %636 = vmatprep.subr.mxu0 0.0
  %637 = vmatpush1.msra.mxu0 0.0
  %638 = vmatprep.subr.mxu0 0.0
  %639 = vmatpush1.msra.mxu0 0.0
  %640 = vmatprep.mubr.f32.mxu0 0.0
  %641 = vmatmul.mubr.f32.gmra.mrb[0].mxu0 %v426
  %v642 = vpop.f32.mrb[0].mxu0
  %v643 = vadd.f32 %v544, %v642
  %v644 = vpop.f32.mrb[0].mxu0
  %v645 = vadd.f32 %v548, %v644
  %646 = vdwg.mxu0
  %647 = vmatprep.subr.mxu0 %v430
  %648 = vmatpush1.msra.mxu0 %v429
  %649 = vmatprep.subr.mxu0 %v437
  %650 = vmatpush1.msra.mxu0 %v436
  %651 = vmatprep.subr.mxu0 %v444
  %652 = vmatpush1.msra.mxu0 %v443
  %653 = vmatprep.subr.mxu0 %v451
  %654 = vmatpush1.msra.mxu0 %v450
  %655 = vmatprep.subr.mxu0 %v458
  %656 = vmatpush1.msra.mxu0 %v457
  %657 = vmatprep.subr.mxu0 %v465
  %658 = vmatpush1.msra.mxu0 %v464
  %659 = vmatprep.subr.mxu0 %v472
  %660 = vmatpush1.msra.mxu0 %v471
  %661 = vmatprep.subr.mxu0 %v479
  %662 = vmatpush1.msra.mxu0 %v478
  %663 = vmatprep.subr.mxu0 %v486
  %664 = vmatpush1.msra.mxu0 %v485
  %665 = vmatprep.subr.mxu0 %v493
  %666 = vmatpush1.msra.mxu0 %v492
  %667 = vmatprep.subr.mxu0 %v500
  %668 = vmatpush1.msra.mxu0 %v499
  %669 = vmatprep.subr.mxu0 %v507
  %670 = vmatpush1.msra.mxu0 %v506
  %671 = vmatprep.subr.mxu0 %v514
  %672 = vmatpush1.msra.mxu0 %v513
  %673 = vmatprep.subr.mxu0 %v521
  %674 = vmatpush1.msra.mxu0 %v520
  %675 = vmatprep.subr.mxu0 %v528
  %676 = vmatpush1.msra.mxu0 %v527
  %677 = vmatprep.subr.mxu0 %v535
  %678 = vmatpush1.msra.mxu0 %v534
  %679 = vmatprep.subr.mxu0 0.0
  %680 = vmatpush1.msra.mxu0 0.0
  %681 = vmatprep.subr.mxu0 0.0
  %682 = vmatpush1.msra.mxu0 0.0
  %683 = vmatprep.subr.mxu0 0.0
  %684 = vmatpush1.msra.mxu0 0.0
  %685 = vmatprep.subr.mxu0 0.0
  %686 = vmatpush1.msra.mxu0 0.0
  %687 = vmatprep.subr.mxu0 0.0
  %688 = vmatpush1.msra.mxu0 0.0
  %689 = vmatprep.subr.mxu0 0.0
  %690 = vmatpush1.msra.mxu0 0.0
  %691 = vmatprep.subr.mxu0 0.0
  %692 = vmatpush1.msra.mxu0 0.0
  %693 = vmatprep.subr.mxu0 0.0
  %694 = vmatpush1.msra.mxu0 0.0
  %695 = vmatprep.subr.mxu0 0.0
  %696 = vmatpush1.msra.mxu0 0.0
  %697 = vmatprep.subr.mxu0 0.0
  %698 = vmatpush1.msra.mxu0 0.0
  %699 = vmatprep.subr.mxu0 0.0
  %700 = vmatpush1.msra.mxu0 0.0
  %701 = vmatprep.subr.mxu0 0.0
  %702 = vmatpush1.msra.mxu0 0.0
  %703 = vmatprep.subr.mxu0 0.0
  %704 = vmatpush1.msra.mxu0 0.0
  %705 = vmatprep.subr.mxu0 0.0
  %706 = vmatpush1.msra.mxu0 0.0
  %707 = vmatprep.subr.mxu0 0.0
  %708 = vmatpush1.msra.mxu0 0.0
  %709 = vmatprep.subr.mxu0 0.0
  %710 = vmatpush1.msra.mxu0 0.0
  %711 = vmatprep.mubr.f32.mxu0 0.0
  %712 = vmatmul.mubr.f32.gmra.mrb[0].mxu0 %v426
  %v713 = vpop.f32.mrb[0].mxu0
  %v714 = vadd.f32 %v552, %v713
  %v715 = vpop.f32.mrb[0].mxu0
  %v716 = vadd.f32 %v556, %v715
  %717 = vdwg.mxu0
  %718 = vmatprep.subr.mxu0 %v432
  %719 = vmatpush1.msra.mxu0 %v431
  %720 = vmatprep.subr.mxu0 %v439
  %721 = vmatpush1.msra.mxu0 %v438
  %722 = vmatprep.subr.mxu0 %v446
  %723 = vmatpush1.msra.mxu0 %v445
  %724 = vmatprep.subr.mxu0 %v453
  %725 = vmatpush1.msra.mxu0 %v452
  %726 = vmatprep.subr.mxu0 %v460
  %727 = vmatpush1.msra.mxu0 %v459
  %728 = vmatprep.subr.mxu0 %v467
  %729 = vmatpush1.msra.mxu0 %v466
  %730 = vmatprep.subr.mxu0 %v474
  %731 = vmatpush1.msra.mxu0 %v473
  %732 = vmatprep.subr.mxu0 %v481
  %733 = vmatpush1.msra.mxu0 %v480
  %734 = vmatprep.subr.mxu0 %v488
  %735 = vmatpush1.msra.mxu0 %v487
  %736 = vmatprep.subr.mxu0 %v495
  %737 = vmatpush1.msra.mxu0 %v494
  %738 = vmatprep.subr.mxu0 %v502
  %739 = vmatpush1.msra.mxu0 %v501
  %740 = vmatprep.subr.mxu0 %v509
  %741 = vmatpush1.msra.mxu0 %v508
  %742 = vmatprep.subr.mxu0 %v516
  %743 = vmatpush1.msra.mxu0 %v515
  %744 = vmatprep.subr.mxu0 %v523
  %745 = vmatpush1.msra.mxu0 %v522
  %746 = vmatprep.subr.mxu0 %v530
  %747 = vmatpush1.msra.mxu0 %v529
  %748 = vmatprep.subr.mxu0 %v537
  %749 = vmatpush1.msra.mxu0 %v536
  %750 = vmatprep.subr.mxu0 0.0
  %751 = vmatpush1.msra.mxu0 0.0
  %752 = vmatprep.subr.mxu0 0.0
  %753 = vmatpush1.msra.mxu0 0.0
  %754 = vmatprep.subr.mxu0 0.0
  %755 = vmatpush1.msra.mxu0 0.0
  %756 = vmatprep.subr.mxu0 0.0
  %757 = vmatpush1.msra.mxu0 0.0
  %758 = vmatprep.subr.mxu0 0.0
  %759 = vmatpush1.msra.mxu0 0.0
  %760 = vmatprep.subr.mxu0 0.0
  %761 = vmatpush1.msra.mxu0 0.0
  %762 = vmatprep.subr.mxu0 0.0
  %763 = vmatpush1.msra.mxu0 0.0
  %764 = vmatprep.subr.mxu0 0.0
  %765 = vmatpush1.msra.mxu0 0.0
  %766 = vmatprep.subr.mxu0 0.0
  %767 = vmatpush1.msra.mxu0 0.0
  %768 = vmatprep.subr.mxu0 0.0
  %769 = vmatpush1.msra.mxu0 0.0
  %770 = vmatprep.subr.mxu0 0.0
  %771 = vmatpush1.msra.mxu0 0.0
  %772 = vmatprep.subr.mxu0 0.0
  %773 = vmatpush1.msra.mxu0 0.0
  %774 = vmatprep.subr.mxu0 0.0
  %775 = vmatpush1.msra.mxu0 0.0
  %776 = vmatprep.subr.mxu0 0.0
  %777 = vmatpush1.msra.mxu0 0.0
  %778 = vmatprep.subr.mxu0 0.0
  %779 = vmatpush1.msra.mxu0 0.0
  %780 = vmatprep.subr.mxu0 0.0
  %781 = vmatpush1.msra.mxu0 0.0
  %782 = vmatprep.mubr.f32.mxu0 0.0
  %783 = vmatmul.mubr.f32.gmra.mrb[0].mxu0 %v426
  %v784 = vpop.f32.mrb[0].mxu0
  %v785 = vadd.f32 %v560, %v784
  %v786 = vpop.f32.mrb[0].mxu0
  %v787 = vadd.f32 %v564, %v786
  %788 = vdwg.mxu0
  %789 = vmatprep.subr.mxu0 0.0
  %790 = vmatpush1.msra.mxu0 %v433
  %791 = vmatprep.subr.mxu0 0.0
  %792 = vmatpush1.msra.mxu0 %v440
  %793 = vmatprep.subr.mxu0 0.0
  %794 = vmatpush1.msra.mxu0 %v447
  %795 = vmatprep.subr.mxu0 0.0
  %796 = vmatpush1.msra.mxu0 %v454
  %797 = vmatprep.subr.mxu0 0.0
  %798 = vmatpush1.msra.mxu0 %v461
  %799 = vmatprep.subr.mxu0 0.0
  %800 = vmatpush1.msra.mxu0 %v468
  %801 = vmatprep.subr.mxu0 0.0
  %802 = vmatpush1.msra.mxu0 %v475
  %803 = vmatprep.subr.mxu0 0.0
  %804 = vmatpush1.msra.mxu0 %v482
  %805 = vmatprep.subr.mxu0 0.0
  %806 = vmatpush1.msra.mxu0 %v489
  %807 = vmatprep.subr.mxu0 0.0
  %808 = vmatpush1.msra.mxu0 %v496
  %809 = vmatprep.subr.mxu0 0.0
  %810 = vmatpush1.msra.mxu0 %v503
  %811 = vmatprep.subr.mxu0 0.0
  %812 = vmatpush1.msra.mxu0 %v510
  %813 = vmatprep.subr.mxu0 0.0
  %814 = vmatpush1.msra.mxu0 %v517
  %815 = vmatprep.subr.mxu0 0.0
  %816 = vmatpush1.msra.mxu0 %v524
  %817 = vmatprep.subr.mxu0 0.0
  %818 = vmatpush1.msra.mxu0 %v531
  %819 = vmatprep.subr.mxu0 0.0
  %820 = vmatpush1.msra.mxu0 %v538
  %821 = vmatprep.subr.mxu0 0.0
  %822 = vmatpush1.msra.mxu0 0.0
  %823 = vmatprep.subr.mxu0 0.0
  %824 = vmatpush1.msra.mxu0 0.0
  %825 = vmatprep.subr.mxu0 0.0
  %826 = vmatpush1.msra.mxu0 0.0
  %827 = vmatprep.subr.mxu0 0.0
  %828 = vmatpush1.msra.mxu0 0.0
  %829 = vmatprep.subr.mxu0 0.0
  %830 = vmatpush1.msra.mxu0 0.0
  %831 = vmatprep.subr.mxu0 0.0
  %832 = vmatpush1.msra.mxu0 0.0
  %833 = vmatprep.subr.mxu0 0.0
  %834 = vmatpush1.msra.mxu0 0.0
  %835 = vmatprep.subr.mxu0 0.0
  %836 = vmatpush1.msra.mxu0 0.0
  %837 = vmatprep.subr.mxu0 0.0
  %838 = vmatpush1.msra.mxu0 0.0
  %839 = vmatprep.subr.mxu0 0.0
  %840 = vmatpush1.msra.mxu0 0.0
  %841 = vmatprep.subr.mxu0 0.0
  %842 = vmatpush1.msra.mxu0 0.0
  %843 = vmatprep.subr.mxu0 0.0
  %844 = vmatpush1.msra.mxu0 0.0
  %845 = vmatprep.subr.mxu0 0.0
  %846 = vmatpush1.msra.mxu0 0.0
  %847 = vmatprep.subr.mxu0 0.0
  %848 = vmatpush1.msra.mxu0 0.0
  %849 = vmatprep.subr.mxu0 0.0
  %850 = vmatpush1.msra.mxu0 0.0
  %851 = vmatprep.subr.mxu0 0.0
  %852 = vmatpush1.msra.mxu0 0.0
  %853 = vmatprep.mubr.f32.mxu0 0.0
  %854 = vmatmul.mubr.f32.gmra.mrb[0].mxu0 %v426
  %v855 = vpop.f32.mrb[0].mxu0
  %v856 = vadd.f32 %v568, %v855
  %v857 = vpop.f32.mrb[0].mxu0
  %858 = vdwg.mxu0
  %v859 = vmul.f32 %v643, 0.5
  %v860 = vmul.f32 %v645, 0.5
  %v861 = vmul.f32 %v714, 0.5
  %v862 = vmul.f32 %v716, 0.5
  %v863 = vmul.f32 %v785, 0.5
  %v864 = vmul.f32 %v787, 0.5
  %v865 = vmul.f32 %v856, 0.5
  %v866 = vtanh.pop %v859
  %v867 = vtanh.pop %v860
  %v868 = vtanh.pop %v861
  %v869 = vtanh.pop %v862
  %v870 = vtanh.pop %v863
  %v871 = vtanh.pop %v864
  %v872 = vtanh.pop %v865
  %v873 = vmul.f32 %v866, 0.5
  %v874 = vmul.f32 %v867, 0.5
  %v875 = vmul.f32 %v868, 0.5
  %v876 = vmul.f32 %v869, 0.5
  %v877 = vmul.f32 %v870, 0.5
  %v878 = vmul.f32 %v871, 0.5
  %v879 = vmul.f32 %v872, 0.5
  %v880 = vadd.f32 %v873, 0.5
  %v881 = vadd.f32 %v874, 0.5
  %v882 = vadd.f32 %v875, 0.5
  %v883 = vadd.f32 %v876, 0.5
  %v884 = vadd.f32 %v877, 0.5
  %v885 = vadd.f32 %v878, 0.5
  %v886 = vadd.f32 %v879, 0.5
  %887 = vst [vmem:[%s9] sm:$0xff] %v880
  %888 = vst [vmem:[%s9 + $0x8] sm:$0xff] %v881
  %889 = vst [vmem:[%s9 + $0x10] sm:$0xff] %v882
  %890 = vst [vmem:[%s9 + $0x18] sm:$0xff] %v883
  %891 = vst [vmem:[%s9 + $0x20] sm:$0xff] %v884
  %892 = vst [vmem:[%s9 + $0x28] sm:$0xff] %v885
  %vm893 = vcmask 130048
  %894 = vst.msk [vmem:[%s9 + $0x30] sm:$0xff] %vm893, %v886
  // Predicated region
  $region38: #{_forward_impl.1} parent=0 // pred_check
    _
  $region39: #{_forward_impl.1} parent=0 // pred_check_branch
    %896 = sbr.rel (0) target = $region41
  $region40: #{_forward_impl.1} parent=0 // pred_region
    _
  $region41: #{_forward_impl.1} parent=0 // pred_fallthru
    _
  // Predicated region
  $region42: #{_forward_impl.1} parent=0 // pred_check
    _
  $region43: #{_forward_impl.1} parent=0 // pred_check_branch
    %898 = sbr.rel (0) target = $region45
  $region44: #{_forward_impl.1} parent=0 // pred_region
    _
  $region45: #{_forward_impl.1} parent=0 // pred_fallthru
    _

</llo_original>
